<compile_context>
chip_gen: v7x
topology: tpu7x:2x2x1
jax: 0.10.0
libtpu: 0.0.40
codegen_flags: <defaults>
</compile_context>

<pallas_src>
import functools

import jax
import jax.numpy as jnp
from jax.experimental import pallas as pl
from jax.experimental.pallas import tpu as pltpu


def _label_smoothing_kernel(x_ref, t_ref, o_ref, acc_ref, *,
                            confidence, smoothing, n_rows, block_rows,
                            steps_per_partial):
    p = pl.program_id(0)   # partial index (parallel axis; megacore shardable)
    s = pl.program_id(1)   # reduction step within this partial

    # Zero the vector accumulator at the start of each partial.
    @pl.when(s == 0)
    def _():
        acc_ref[...] = jnp.zeros_like(acc_ref)

    x = x_ref[...].astype(jnp.float32)               # (TM, C)
    t = t_ref[...]                                   # (TM, 1) int32
    c = x.shape[-1]

    # Fused loss:  loss_row = logsumexp(x) - sum(x * (conf*onehot + smooth/C))
    # (equivalent to conf*nll + smooth*mean since conf + smooth == 1).
    m = jnp.max(x, axis=-1, keepdims=True)                        # (TM, 1)
    sumexp = jnp.sum(jnp.exp(x - m), axis=-1, keepdims=True)      # (TM, 1)
    lse = m + jnp.log(sumexp)                                     # (TM, 1)

    class_ids = jax.lax.broadcasted_iota(jnp.int32, x.shape, 1)
    w = jnp.where(class_ids == t, confidence + smoothing / c, smoothing / c)
    wsum = jnp.sum(x * w, axis=-1, keepdims=True)                 # (TM, 1)

    loss = lse - wsum                                             # (TM, 1)

    # Mask rows past the true batch size.  Ragged / duplicated blocks read
    # stale VMEM which may produce NaN/Inf; this MUST stay a select (not a
    # multiply) so those values cannot propagate into the accumulator.
    global_block = p * steps_per_partial + s
    row_ids = global_block * block_rows + jax.lax.broadcasted_iota(
        jnp.int32, loss.shape, 0)
    acc_ref[...] += jnp.where(row_ids < n_rows, loss, 0.0)

    # Last step of this partial: reduce the accumulator once and write a
    # lane-dense (1, 8, 128) tile holding the partial sum.
    @pl.when(s == steps_per_partial - 1)
    def _():
        partial = jnp.sum(acc_ref[...])
        o_ref[...] = jnp.broadcast_to(partial, o_ref.shape).astype(jnp.float32)


def label_smoothing_loss(x, target, smoothing=0.1, block_rows=None,
                         num_partials=None):
    """x: (N, C) float logits, target: (N,) int class ids. Returns scalar."""
    n, c = x.shape
    confidence = 1.0 - smoothing
    t2d = target.astype(jnp.int32).reshape(n, 1)

    if block_rows is None:
        # Byte-based tiling: ~4 MiB of x per pipeline buffer.  Row cap keeps
        # the lane-padded (TM, 1) target buffers / accumulator small so the
        # whole working set stays well under the 48 MiB scoped-VMEM limit
        # below (safe on v7x's 64 MiB physical VMEM, trivial on v5e/v6e).
        per_buffer_bytes = 4 * 1024 * 1024
        rows = per_buffer_bytes // max(1, c * x.dtype.itemsize)
        block_rows = min(int(rows), 4096)
    block_rows = max(8, (int(block_rows) // 8) * 8)   # (8,128) sublane rule
    if block_rows >= n:
        block_rows = n   # single full-extent block (any N allowed)

    num_blocks = pl.cdiv(n, block_rows)
    if num_partials is None:
        num_partials = 2 if num_blocks >= 2 else 1   # v7x: one per TensorCore
    num_partials = max(1, min(int(num_partials), num_blocks))
    steps_per_partial = pl.cdiv(num_blocks, num_partials)

    def in_map(pi, si):
        gb = pi * steps_per_partial + si
        # Clamp duplicated trailing blocks (masked to zero inside the kernel).
        return (jnp.minimum(gb, num_blocks - 1), 0)

    kernel = functools.partial(
        _label_smoothing_kernel,
        confidence=confidence, smoothing=smoothing,
        n_rows=n, block_rows=block_rows,
        steps_per_partial=steps_per_partial)

    partials = pl.pallas_call(
        kernel,
        out_shape=jax.ShapeDtypeStruct((num_partials, 8, 128), jnp.float32),
        grid=(num_partials, steps_per_partial),
        in_specs=[
            pl.BlockSpec((block_rows, c), in_map),
            pl.BlockSpec((block_rows, 1), in_map),
        ],
        out_specs=pl.BlockSpec((1, 8, 128), lambda pi, si: (pi, 0, 0)),
        scratch_shapes=[pltpu.VMEM((block_rows, 1), jnp.float32)],
        compiler_params=pltpu.CompilerParams(
            dimension_semantics=("parallel", "arbitrary"),
            vmem_limit_bytes=48 * 1024 * 1024),
    )(x, t2d)

    return jnp.sum(partials[:, 0, 0]) / jnp.float32(n)


def _reference(x, target, smoothing=0.1):
    confidence = 1.0 - smoothing
    logprobs = jax.nn.log_softmax(x, axis=-1)
    nll = -jnp.take_along_axis(logprobs, target[:, None], axis=-1)[:, 0]
    smooth = -jnp.mean(logprobs, axis=-1)
    return jnp.mean(confidence * nll + smoothing * smooth)


if __name__ == "__main__":
    key = jax.random.PRNGKey(0)
    kx, kt = jax.random.split(key)

    smoothing = 0.1
    N, C = 40, 32   # batch=40 samples, 32 classes (small, module-consistent)

    x = jax.random.normal(kx, (N, C), dtype=jnp.float32)
    target = jax.random.randint(kt, (N,), 0, C, dtype=jnp.int32)

    ref = jax.block_until_ready(_reference(x, target, smoothing=smoothing))

    # Default tiling (single full block, single partial for this small N).
    loss = jax.block_until_ready(
        label_smoothing_loss(x, target, smoothing=smoothing))
    assert jnp.allclose(loss, ref, atol=1e-5, rtol=1e-5), (loss, ref)

    # Multi-block, two-partial path: 3 row blocks over 2 partials exercises the
    # VMEM accumulator, the clamped duplicated block, the ragged final block
    # and the per-partial lane-dense writeback.
    loss_tiled = jax.block_until_ready(
        label_smoothing_loss(x, target, smoothing=smoothing, block_rows=16))
    assert jnp.allclose(loss_tiled, ref, atol=1e-5, rtol=1e-5), (loss_tiled, ref)

    # Forced single-partial tiled path for coverage.
    loss_1p = jax.block_until_ready(
        label_smoothing_loss(x, target, smoothing=smoothing, block_rows=16,
                             num_partials=1))
    assert jnp.allclose(loss_1p, ref, atol=1e-5, rtol=1e-5), (loss_1p, ref)

    print("KERNEL_OK")
</pallas_src>

<mosaic_0001>
module attributes {stable_mosaic.version = 11 : i64} {
  func.func @_label_smoothing_kernel(%arg0: i32, %arg1: i32, %arg2: memref<40x32xf32, #tpu.memory_space<vmem>>, %arg3: memref<40x1xi32, #tpu.memory_space<vmem>>, %arg4: memref<1x8x128xf32, #tpu.memory_space<vmem>>, %arg5: memref<40x1xf32, #tpu.memory_space<vmem>>) attributes {dimension_semantics = [#tpu.dimension_semantics<parallel>, #tpu.dimension_semantics<arbitrary>], iteration_bounds = array<i64: 1, 1>, scalar_prefetch = 0 : i64, scratch_operands = 1 : i64, tpu.core_type = #tpu.core_type<tc>, window_params = [{transform_indices = @transform_0, window_bounds = array<i64: 40, 32>}, {transform_indices = @transform_1, window_bounds = array<i64: 40, 1>}, {transform_indices = @transform_2, window_bounds = array<i64: 1, 8, 128>}]} {
    %c0_i32 = arith.constant 0 : i32
    %0 = arith.cmpi eq, %arg1, %c0_i32 : i32
    %1 = arith.extui %0 : i1 to i32
    %c0_i32_0 = arith.constant 0 : i32
    %2 = arith.cmpi ne, %1, %c0_i32_0 : i32
    scf.if %2 {
      %cst_16 = arith.constant 0.000000e+00 : f32
      %40 = vector.broadcast %cst_16 : f32 to vector<40x1xf32>
      %c0_17 = arith.constant 0 : index
      %c0_18 = arith.constant 0 : index
      %41 = vector.load %arg5[%c0_17, %c0_18] : memref<40x1xf32, #tpu.memory_space<vmem>>, vector<40x1xf32>
      tpu.vector_store %arg5[%c0_17, %c0_18], %40 {strides = array<i32>} : memref<40x1xf32, #tpu.memory_space<vmem>>, vector<40x1xf32>,
    } else {
    }
    %c0 = arith.constant 0 : index
    %c0_1 = arith.constant 0 : index
    %3 = vector.load %arg2[%c0, %c0_1] : memref<40x32xf32, #tpu.memory_space<vmem>>, vector<40x32xf32>
    %c0_2 = arith.constant 0 : index
    %c0_3 = arith.constant 0 : index
    %4 = vector.load %arg3[%c0_2, %c0_3] : memref<40x1xi32, #tpu.memory_space<vmem>>, vector<40x1xi32>
    %cst = arith.constant dense<0xFF800000> : vector<40xf32>
    %5 = vector.multi_reduction <maximumf>, %3, %cst [1] : vector<40x32xf32> to vector<40xf32>
    %6 = vector.shape_cast %5 : vector<40xf32> to vector<40x1xf32>
    %7 = vector.broadcast %6 : vector<40x1xf32> to vector<40x32xf32>
    %8 = arith.subf %3, %7 : vector<40x32xf32>
    %9 = math.exp %8 : vector<40x32xf32>
    %cst_4 = arith.constant dense<0.000000e+00> : vector<40xf32>
    %10 = vector.multi_reduction <add>, %9, %cst_4 [1] : vector<40x32xf32> to vector<40xf32>
    %11 = vector.shape_cast %10 : vector<40xf32> to vector<40x1xf32>
    %12 = math.log %11 : vector<40x1xf32>
    %13 = arith.addf %6, %12 : vector<40x1xf32>
    %14 = tpu.iota {dimensions = array<i32: 1>} : vector<40x32xi32>
    %15 = vector.broadcast %4 : vector<40x1xi32> to vector<40x32xi32>
    %16 = arith.cmpi eq, %14, %15 : vector<40x32xi32>
    %cst_5 = arith.constant 0.903124988 : f32
    %cst_6 = arith.constant 3.125000e-03 : f32
    %17 = vector.broadcast %cst_5 : f32 to vector<40x32xf32>
    %18 = vector.broadcast %cst_6 : f32 to vector<40x32xf32>
    %19 = arith.select %16, %17, %18 : vector<40x32xi1>, vector<40x32xf32>
    %20 = arith.mulf %3, %19 : vector<40x32xf32>
    %cst_7 = arith.constant dense<0.000000e+00> : vector<40xf32>
    %21 = vector.multi_reduction <add>, %20, %cst_7 [1] : vector<40x32xf32> to vector<40xf32>
    %22 = vector.shape_cast %21 : vector<40xf32> to vector<40x1xf32>
    %23 = arith.subf %13, %22 : vector<40x1xf32>
    %c1_i32 = arith.constant 1 : i32
    %24 = arith.muli %arg0, %c1_i32 : i32
    %25 = arith.addi %24, %arg1 : i32
    %c40_i32 = arith.constant 40 : i32
    %26 = arith.muli %25, %c40_i32 : i32
    %27 = tpu.iota {dimensions = array<i32: 0>} : vector<40x1xi32>
    %28 = vector.broadcast %26 : i32 to vector<40x1xi32>
    %29 = arith.addi %28, %27 : vector<40x1xi32>
    %c0_8 = arith.constant 0 : index
    %c0_9 = arith.constant 0 : index
    %30 = vector.load %arg5[%c0_8, %c0_9] : memref<40x1xf32, #tpu.memory_space<vmem>>, vector<40x1xf32>
    %c40_i32_10 = arith.constant 40 : i32
    %31 = vector.broadcast %c40_i32_10 : i32 to vector<40x1xi32>
    %32 = arith.cmpi slt, %29, %31 : vector<40x1xi32>
    %cst_11 = arith.constant 0.000000e+00 : f32
    %33 = vector.broadcast %cst_11 : f32 to vector<40x1xf32>
    %34 = arith.select %32, %23, %33 : vector<40x1xi1>, vector<40x1xf32>
    %35 = arith.addf %30, %34 : vector<40x1xf32>
    %c0_12 = arith.constant 0 : index
    %c0_13 = arith.constant 0 : index
    %36 = vector.load %arg5[%c0_12, %c0_13] : memref<40x1xf32, #tpu.memory_space<vmem>>, vector<40x1xf32>
    tpu.vector_store %arg5[%c0_12, %c0_13], %35 {strides = array<i32>} : memref<40x1xf32, #tpu.memory_space<vmem>>, vector<40x1xf32>,
    %c0_i32_14 = arith.constant 0 : i32
    %37 = arith.cmpi eq, %arg1, %c0_i32_14 : i32
    %38 = arith.extui %37 : i1 to i32
    %c0_i32_15 = arith.constant 0 : i32
    %39 = arith.cmpi ne, %38, %c0_i32_15 : i32
    scf.if %39 {
      %c0_16 = arith.constant 0 : index
      %c0_17 = arith.constant 0 : index
      %40 = vector.load %arg5[%c0_16, %c0_17] : memref<40x1xf32, #tpu.memory_space<vmem>>, vector<40x1xf32>
      %41 = vector.shape_cast %40 : vector<40x1xf32> to vector<1x40x1xf32>
      %cst_18 = arith.constant dense<0.000000e+00> : vector<1xf32>
      %42 = vector.multi_reduction <add>, %41, %cst_18 [1, 2] : vector<1x40x1xf32> to vector<1xf32>
      %43 = vector.shape_cast %42 : vector<1xf32> to vector<1x1x1xf32>
      %44 = vector.extract %43[0, 0, 0] : f32 from vector<1x1x1xf32>
      %45 = vector.broadcast %44 : f32 to vector<1x8x128xf32>
      %c0_19 = arith.constant 0 : index
      %c0_20 = arith.constant 0 : index
      %c0_21 = arith.constant 0 : index
      %46 = vector.load %arg4[%c0_19, %c0_20, %c0_21] : memref<1x8x128xf32, #tpu.memory_space<vmem>>, vector<1x8x128xf32>
      tpu.vector_store %arg4[%c0_19, %c0_20, %c0_21], %45 {strides = array<i32>} : memref<1x8x128xf32, #tpu.memory_space<vmem>>, vector<1x8x128xf32>,
    } else {
    }
    return
  }
  func.func @transform_0(%arg0: i32, %arg1: i32) -> (i32, i32) {
    %c1_i32 = arith.constant 1 : i32
    %0 = arith.muli %arg0, %c1_i32 : i32
    %1 = arith.addi %0, %arg1 : i32
    %c0_i32 = arith.constant 0 : i32
    %2 = arith.minsi %1, %c0_i32 : i32
    %c0_i32_0 = arith.constant 0 : i32
    %c0_i32_1 = arith.constant 0 : i32
    return %2, %c0_i32_0 : i32, i32
  }
  func.func @transform_1(%arg0: i32, %arg1: i32) -> (i32, i32) {
    %c1_i32 = arith.constant 1 : i32
    %0 = arith.muli %arg0, %c1_i32 : i32
    %1 = arith.addi %0, %arg1 : i32
    %c0_i32 = arith.constant 0 : i32
    %2 = arith.minsi %1, %c0_i32 : i32
    %c0_i32_0 = arith.constant 0 : i32
    %c0_i32_1 = arith.constant 0 : i32
    return %2, %c0_i32_0 : i32, i32
  }
  func.func @transform_2(%arg0: i32, %arg1: i32) -> (i32, i32, i32) {
    %c0_i32 = arith.constant 0 : i32
    %c0_i32_0 = arith.constant 0 : i32
    %c0_i32_1 = arith.constant 0 : i32
    return %arg0, %c0_i32, %c0_i32_0 : i32, i32, i32
  }
}

</mosaic_0001>

<llo_original>
// kernel: tpu_custom_call.1
$region0: #{tpu_custom_call.1}
  #allocation0 [shape = 'u32[]', space=smem, size = 0x4, offset = 0x4, fixed_abs, tag = 'smem constant byte address 0x4 - core index']
  #allocation1 [shape = 'u32[144,128]{1,0:T(1,128)}', space=vmem, size = 0x12000, scoped, tag = 'internal scratch']
  #allocation2 [shape = 'f32[40,1]{1,0:T(8,128)}', space=vmem, size = 0x5000, scoped, tag = 'scratch operand']
  %s0 = inlined_call_operand.vmem [shape: f32[40,32], index: 0, kind: input, shape index: {}]
  %s1 = inlined_call_operand.vmem [shape: s32[40,1], index: 1, kind: input, shape index: {}]
  %s2 = inlined_call_operand.hbm [shape: f32[1,8,128], index: 2, kind: output, shape index: {}]
  %s3 = sld [smem:[#allocation0]]
  $region26: #{tpu_custom_call.1} parent=0
    _
  %s5 = ssub.s32 1, %s3
  %s6 = scalar_select 0, %s5, %s3
  $region1: #{tpu_custom_call.1} parent=0
    #allocation3 [shape = 'u8[4096]{0}', space=vmem, size = 0x1000, scoped, tag = 'output window, operand 0, single buffered']
    #allocation4 [shape = 's32[1]{0}', space=sflag, size = 0x4, scoped, tag = 'scoped memory for tpu_custom_call.1']
    %7 = vsyncpa [#allocation4], 0
    // Predicated region
    $region2: #{tpu_custom_call.1} parent=1 // pred_check
      _
    $region3: #{tpu_custom_call.1} parent=1 // pred_check_branch
      %9 = sbr.rel (0) target = $region5
    $region4: #{tpu_custom_call.1} parent=1 // pred_region
      %s10 = sadd.s32 0, 0
      %p11 = scmp.lt.s32.totalorder %s10, 0
      %s12 = scalar_select %p11, %s10, 0
      %s13 = smul.u32 5, %s12
      %p14 = scmp.lt.s32.totalorder %s13, 4
      %s15 = scalar_select %p14, %s13, 4
      %s16 = smul.addr %s15, 8
      %s17 = scalar_lea.vmem %s0, %s16
      %s18 = sadd.s32 0, 0
      %p19 = scmp.lt.s32.totalorder %s18, 0
      %s20 = scalar_select %p19, %s18, 0
      %s21 = smul.u32 5, %s20
    $region5: #{tpu_custom_call.1} parent=1 // pred_fallthru
      _
    // Predicated region
    $region6: #{tpu_custom_call.1} parent=1 // pred_check
      _
    $region7: #{tpu_custom_call.1} parent=1 // pred_check_branch
      %23 = sbr.rel (0) target = $region9
    $region8: #{tpu_custom_call.1} parent=1 // pred_region
      %s24 = sadd.s32 0, 0
      %p25 = scmp.lt.s32.totalorder %s24, 0
      %s26 = scalar_select %p25, %s24, 0
      %s27 = smul.u32 5, %s26
      %p28 = scmp.lt.s32.totalorder %s27, 4
      %s29 = scalar_select %p28, %s27, 4
      %s30 = smul.addr %s29, 8
      %s31 = scalar_lea.vmem %s1, %s30
      %s32 = sadd.s32 0, 0
      %p33 = scmp.lt.s32.totalorder %s32, 0
      %s34 = scalar_select %p33, %s32, 0
      %s35 = smul.u32 5, %s34
    $region9: #{tpu_custom_call.1} parent=1 // pred_fallthru
      _
    %s36 = sadd.s32 0, 0
    %p37 = scmp.lt.s32.totalorder %s36, 0
    %s38 = scalar_select %p37, %s36, 0
    %s39 = smul.u32 5, %s38
    %p40 = scmp.lt.s32.totalorder %s39, 4
    %s41 = scalar_select %p40, %s39, 4
    %s42 = smul.addr %s41, 8
    %s43 = scalar_lea.vmem %s0, %s42
    %s44 = sadd.s32 0, 0
    %p45 = scmp.lt.s32.totalorder %s44, 0
    %s46 = scalar_select %p45, %s44, 0
    %s47 = smul.u32 5, %s46
    %p48 = scmp.lt.s32.totalorder %s47, 4
    %s49 = scalar_select %p48, %s47, 4
    %s50 = smul.addr %s49, 8
    %s51 = scalar_lea.vmem %s1, %s50
    %s52 = sadd.s32 0, 0
    %p53 = scmp.lt.s32.totalorder %s52, 0
    %s54 = scalar_select %p53, %s52, 0
    %s55 = smul.u32 5, %s54
    %p56 = scmp.lt.s32.totalorder %s55, 4
    %s57 = scalar_select %p56, %s55, 4
    %s58 = smul.addr %s57, 8
    %s59 = scalar_lea.vmem %s0, %s58
    %s60 = sadd.s32 0, 0
    %p61 = scmp.lt.s32.totalorder %s60, 0
    %s62 = scalar_select %p61, %s60, 0
    %s63 = smul.u32 5, %s62
    %s64 = sadd.s32 0, 0
    %p65 = scmp.lt.s32.totalorder %s64, 0
    %s66 = scalar_select %p65, %s64, 0
    %s67 = smul.u32 5, %s66
    %p68 = scmp.lt.s32.totalorder %s67, 4
    %s69 = scalar_select %p68, %s67, 4
    %s70 = smul.addr %s69, 8
    %s71 = scalar_lea.vmem %s1, %s70
    %s72 = sadd.s32 0, 0
    %p73 = scmp.lt.s32.totalorder %s72, 0
    %s74 = scalar_select %p73, %s72, 0
    %s75 = smul.u32 5, %s74
    %p76 = scmp.eq.s32.totalorder 0, 0
    // Predicated region
    $region10: #{tpu_custom_call.1} parent=1 // pred_check
      %p77 = pneg %p76
    $region11: #{tpu_custom_call.1} parent=1 // pred_check_branch
      %79 = sbr.rel (%p77) target = $region13
    $region12: #{tpu_custom_call.1} parent=1 // pred_region
      %vm80 = vcmask 7168
      %81 = vst.msk [vmem:[#allocation2] sm:$0xff] %vm80, 0.0
      %82 = vst.msk [vmem:[#allocation2 + $0x8] sm:$0xff] %vm80, 0.0
      %83 = vst.msk [vmem:[#allocation2 + $0x10] sm:$0xff] %vm80, 0.0
      %84 = vst.msk [vmem:[#allocation2 + $0x18] sm:$0xff] %vm80, 0.0
      %85 = vst.msk [vmem:[#allocation2 + $0x20] sm:$0xff] %vm80, 0.0
    $region13: #{tpu_custom_call.1} parent=1 // pred_fallthru
      _
    %v86 = vld [vmem:[%s59] sm:$0xff]
    %v87 = vld [vmem:[%s59 + $0x8] sm:$0xff]
    %v88 = vld [vmem:[%s59 + $0x10] sm:$0xff]
    %v89 = vld [vmem:[%s59 + $0x18] sm:$0xff]
    %v90 = vld [vmem:[%s59 + $0x20] sm:$0xff]
    %v91 = vld [vmem:[%s71] sm:$0xff]
    %v92 = vld [vmem:[%s71 + $0x8] sm:$0xff]
    %v93 = vld [vmem:[%s71 + $0x10] sm:$0xff]
    %v94 = vld [vmem:[%s71 + $0x18] sm:$0xff]
    %v95 = vld [vmem:[%s71 + $0x20] sm:$0xff]
    %vm96 = vcmask 261120
    %v97 = vsel %vm96, %v86, -inf
    %98 = vmax.xlane.f32.xlu0 %v97
    %v99 = vpop.xlane.xlu0 %98
    %v100 = vsel %vm96, %v87, -inf
    %101 = vmax.xlane.f32.xlu0 %v100
    %v102 = vpop.xlane.xlu0 %101
    %v103 = vsel %vm96, %v88, -inf
    %104 = vmax.xlane.f32.xlu0 %v103
    %v105 = vpop.xlane.xlu0 %104
    %v106 = vsel %vm96, %v89, -inf
    %107 = vmax.xlane.f32.xlu0 %v106
    %v108 = vpop.xlane.xlu0 %107
    %v109 = vsel %vm96, %v90, -inf
    %110 = vmax.xlane.f32.xlu0 %v109
    %v111 = vpop.xlane.xlu0 %110
    %v112 = vsub.f32 %v86, %v99
    %v113 = vsub.f32 %v87, %v102
    %v114 = vsub.f32 %v88, %v105
    %v115 = vsub.f32 %v89, %v108
    %v116 = vsub.f32 %v90, %v111
    %v117 = vmul.f32 %v112, 1.442695
    %v118 = vpow.pop %v117
    %v119 = vmul.f32 %v113, 1.442695
    %v120 = vpow.pop %v119
    %v121 = vmul.f32 %v114, 1.442695
    %v122 = vpow.pop %v121
    %v123 = vmul.f32 %v115, 1.442695
    %v124 = vpow.pop %v123
    %v125 = vmul.f32 %v116, 1.442695
    %v126 = vpow.pop %v125
    %v127 = vsel %vm96, %v118, 0.0
    %128 = vadd.xlane.f32.xlu0 %v127
    %v129 = vpop.xlane.xlu0 %128
    %v130 = vsel %vm96, %v120, 0.0
    %131 = vadd.xlane.f32.xlu0 %v130
    %v132 = vpop.xlane.xlu0 %131
    %v133 = vsel %vm96, %v122, 0.0
    %134 = vadd.xlane.f32.xlu0 %v133
    %v135 = vpop.xlane.xlu0 %134
    %v136 = vsel %vm96, %v124, 0.0
    %137 = vadd.xlane.f32.xlu0 %v136
    %v138 = vpop.xlane.xlu0 %137
    %v139 = vsel %vm96, %v126, 0.0
    %140 = vadd.xlane.f32.xlu0 %v139
    %v141 = vpop.xlane.xlu0 %140
    %v142 = vlog2.pop %v129
    %v143 = vmul.f32 %v142, 0.6931472
    %v144 = vlog2.pop %v132
    %v145 = vmul.f32 %v144, 0.6931472
    %v146 = vlog2.pop %v135
    %v147 = vmul.f32 %v146, 0.6931472
    %v148 = vlog2.pop %v138
    %v149 = vmul.f32 %v148, 0.6931472
    %v150 = vlog2.pop %v141
    %v151 = vmul.f32 %v150, 0.6931472
    %v152 = vadd.f32 %v99, %v143
    %v153 = vadd.f32 %v102, %v145
    %v154 = vadd.f32 %v105, %v147
    %v155 = vadd.f32 %v108, %v149
    %v156 = vadd.f32 %v111, %v151
    %v157 = vlaneseq
    %v158 = vand.u32 %v157, 127
    %159 = vset.pattern.permute.xlu0 0
    %160 = vperm.xlu0 %159, %v91
    %v161 = vpop.permute.xlu0 %160
    %162 = vset.pattern.permute.xlu0 0
    %163 = vperm.xlu0 %162, %v92
    %v164 = vpop.permute.xlu0 %163
    %165 = vset.pattern.permute.xlu0 0
    %166 = vperm.xlu0 %165, %v93
    %v167 = vpop.permute.xlu0 %166
    %168 = vset.pattern.permute.xlu0 0
    %169 = vperm.xlu0 %168, %v94
    %v170 = vpop.permute.xlu0 %169
    %171 = vset.pattern.permute.xlu0 0
    %172 = vperm.xlu0 %171, %v95
    %v173 = vpop.permute.xlu0 %172
    %vm174 = vcmp.eq.s32.totalorder %v158, %v161
    %vm175 = vcmp.eq.s32.totalorder %v158, %v164
    %vm176 = vcmp.eq.s32.totalorder %v158, %v167
    %vm177 = vcmp.eq.s32.totalorder %v158, %v170
    %vm178 = vcmp.eq.s32.totalorder %v158, %v173
    %v179 = vsel %vm174, 0.903125, 0.003125
    %v180 = vsel %vm175, 0.903125, 0.003125
    %v181 = vsel %vm176, 0.903125, 0.003125
    %v182 = vsel %vm177, 0.903125, 0.003125
    %v183 = vsel %vm178, 0.903125, 0.003125
    %v184 = vmul.f32 %v86, %v179
    %v185 = vmul.f32 %v87, %v180
    %v186 = vmul.f32 %v88, %v181
    %v187 = vmul.f32 %v89, %v182
    %v188 = vmul.f32 %v90, %v183
    %v189 = vsel %vm96, %v184, 0.0
    %190 = vadd.xlane.f32.xlu0 %v189
    %v191 = vpop.xlane.xlu0 %190
    %v192 = vsel %vm96, %v185, 0.0
    %193 = vadd.xlane.f32.xlu0 %v192
    %v194 = vpop.xlane.xlu0 %193
    %v195 = vsel %vm96, %v186, 0.0
    %196 = vadd.xlane.f32.xlu0 %v195
    %v197 = vpop.xlane.xlu0 %196
    %v198 = vsel %vm96, %v187, 0.0
    %199 = vadd.xlane.f32.xlu0 %v198
    %v200 = vpop.xlane.xlu0 %199
    %v201 = vsel %vm96, %v188, 0.0
    %202 = vadd.xlane.f32.xlu0 %v201
    %v203 = vpop.xlane.xlu0 %202
    %v204 = vsub.f32 %v152, %v191
    %v205 = vsub.f32 %v153, %v194
    %v206 = vsub.f32 %v154, %v197
    %v207 = vsub.f32 %v155, %v200
    %v208 = vsub.f32 %v156, %v203
    %s209 = sadd.s32 0, 0
    %s210 = smul.u32 %s209, 40
    %v211 = vlaneseq
    %v212 = vshrl.u32 %v211, 7
    %v213 = vadd.s32 %v212, 8
    %v214 = vadd.s32 %v212, 16
    %v215 = vadd.s32 %v212, 24
    %v216 = vadd.s32 %v212, 32
    %v217 = vstv %s210
    %v218 = vadd.s32 %v217, %v212
    %v219 = vadd.s32 %v217, %v213
    %v220 = vadd.s32 %v217, %v214
    %v221 = vadd.s32 %v217, %v215
    %v222 = vadd.s32 %v217, %v216
    %v223 = vld [vmem:[#allocation2] sm:$0xff]
    %v224 = vld [vmem:[#allocation2 + $0x8] sm:$0xff]
    %v225 = vld [vmem:[#allocation2 + $0x10] sm:$0xff]
    %v226 = vld [vmem:[#allocation2 + $0x18] sm:$0xff]
    %v227 = vld [vmem:[#allocation2 + $0x20] sm:$0xff]
    %vm228 = vcmp.lt.s32.totalorder %v218, 40
    %vm229 = vcmp.lt.s32.totalorder %v219, 40
    %vm230 = vcmp.lt.s32.totalorder %v220, 40
    %vm231 = vcmp.lt.s32.totalorder %v221, 40
    %vm232 = vcmp.lt.s32.totalorder %v222, 40
    %v233 = vsel %vm228, %v204, 0.0
    %v234 = vsel %vm229, %v205, 0.0
    %v235 = vsel %vm230, %v206, 0.0
    %v236 = vsel %vm231, %v207, 0.0
    %v237 = vsel %vm232, %v208, 0.0
    %v238 = vadd.f32 %v223, %v233
    %v239 = vadd.f32 %v224, %v234
    %v240 = vadd.f32 %v225, %v235
    %v241 = vadd.f32 %v226, %v236
    %v242 = vadd.f32 %v227, %v237
    %vm243 = vcmask 7168
    %244 = vst.msk [vmem:[#allocation2] sm:$0xff] %vm243, %v238
    %245 = vst.msk [vmem:[#allocation2 + $0x8] sm:$0xff] %vm243, %v239
    %246 = vst.msk [vmem:[#allocation2 + $0x10] sm:$0xff] %vm243, %v240
    %247 = vst.msk [vmem:[#allocation2 + $0x18] sm:$0xff] %vm243, %v241
    %248 = vst.msk [vmem:[#allocation2 + $0x20] sm:$0xff] %vm243, %v242
    // Predicated region
    $region14: #{tpu_custom_call.1} parent=1 // pred_check
      %p249 = pneg %p76
    $region15: #{tpu_custom_call.1} parent=1 // pred_check_branch
      %251 = sbr.rel (%p249) target = $region17
    $region16: #{tpu_custom_call.1} parent=1 // pred_region
      %v252 = vld [vmem:[#allocation2] sm:$0xff]
      %v253 = vld [vmem:[#allocation2 + $0x8] sm:$0xff]
      %v254 = vld [vmem:[#allocation2 + $0x10] sm:$0xff]
      %v255 = vld [vmem:[#allocation2 + $0x18] sm:$0xff]
      %v256 = vld [vmem:[#allocation2 + $0x20] sm:$0xff]
      %v257 = vsel %vm243, %v252, 0.0
      %v258 = vsel %vm243, %v253, 0.0
      %v259 = vadd.f32 %v257, %v258
      %v260 = vsel %vm243, %v254, 0.0
      %v261 = vadd.f32 %v259, %v260
      %v262 = vsel %vm243, %v255, 0.0
      %v263 = vadd.f32 %v261, %v262
      %v264 = vsel %vm243, %v256, 0.0
      %v265 = vadd.f32 %v263, %v264
      %266 = vadd.xlane.f32.xlu0 %v265
      %v267 = vpop.xlane.xlu0 %266
      %v268 = vrot.slane %v267, 4
      %v269 = vadd.f32 %v267, %v268
      %v270 = vrot.slane %v269, 2
      %v271 = vadd.f32 %v269, %v270
      %v272 = vrot.slane %v271, 1
      %v273 = vadd.f32 %v271, %v272
      %s274 = vtos %v273
      %v275 = vstv %s274
      %276 = vst [vmem:[#allocation3] sm:$0xff] %v275
    $region17: #{tpu_custom_call.1} parent=1 // pred_fallthru
      _
    // Predicated region
    $region18: #{tpu_custom_call.1} parent=1 // pred_check
      _
    $region19: #{tpu_custom_call.1} parent=1 // pred_check_branch
      %278 = sbr.rel (0) target = $region21
    $region20: #{tpu_custom_call.1} parent=1 // pred_region
      %s280 = ssub.s32 128, 128
      %281 = vsyncadd [#allocation4], %s280
      %s283 = sshll.u32 [#allocation3], 4
      %s284 = int_to_ptr.vmem [resolvable:$true] %s283
      %286 = dma.vmem_to_hbm [thread:$0]  %s284, 128, %s2, [#allocation4]
    $region21: #{tpu_custom_call.1} parent=1 // pred_fallthru
      _
    // Predicated region
    $region22: #{tpu_custom_call.1} parent=1 // pred_check
      _
    $region23: #{tpu_custom_call.1} parent=1 // pred_check_branch
      %288 = sbr.rel (0) target = $region25
    $region24: #{tpu_custom_call.1} parent=1 // pred_region
      %289 = dma.done [#allocation4], 128
    $region25: #{tpu_custom_call.1} parent=1 // pred_fallthru
      _
    %290 = vsyncpa [#allocation4], 1

</llo_original>
